<compile_context>
chip_gen: v7x
topology: tpu7x:2x2x1
jax: 0.10.0
libtpu: 0.0.40
codegen_flags: <defaults>
</compile_context>

<pallas_src>
import jax
import jax.numpy as jnp
from jax.experimental import pallas as pl
from jax.experimental.pallas import tpu as pltpu


def _linear_kernel(x_ref, w_ref, b_ref, o_ref):
    # x_ref: (tile_m, K)   row-tile of the activations
    # w_ref: (K, N)        full transposed weight, VMEM-resident
    # b_ref: (1, N)        full bias, VMEM-resident
    # o_ref: (tile_m, N)   full-width (lane-dense) output slab
    acc = jnp.dot(x_ref[...], w_ref[...], preferred_element_type=jnp.float32)
    o_ref[...] = (acc + b_ref[...]).astype(o_ref.dtype)


def _round_up(a, b):
    return ((a + b - 1) // b) * b


def _round_down(a, b):
    return max(b, (a // b) * b)


def text_embedding_forward(x, weight, bias, *, tile_m=1024):
    """Pallas implementation of nn.Linear(in_dim, embedding_dim) applied to x.

    x:      (batch, seq, in_dim)
    weight: (embedding_dim, in_dim)   -- PyTorch nn.Linear layout
    bias:   (embedding_dim,)
    returns (batch, seq, embedding_dim)
    """
    batch, seq, in_dim = x.shape
    emb_dim, in_dim_w = weight.shape
    assert in_dim == in_dim_w

    M = batch * seq
    K = in_dim
    N = emb_dim

    x2d = x.reshape(M, K)
    w_t = weight.T                      # (K, N)
    b2d = bias.reshape(1, N)            # 2D so it maps onto lanes

    # --- choose the M tile -------------------------------------------------
    # Budget ~16 MiB for the double-buffered streaming tiles (x + y, f32),
    # leaving headroom under the default scoped VMEM limit on every TPU
    # generation (incl. v7x's 64 MiB VMEM).  W (K*N*4) + bias are tiny and
    # kept resident.
    budget_bytes = 16 * 1024 * 1024
    max_tm = _round_down(budget_bytes // (2 * 4 * (K + N)), 8)
    tm = min(_round_up(M, 8), _round_up(tile_m, 8), max_tm)

    # Non-divisible M is handled by Pallas edge masking (no pad/slice copies).
    grid = (pl.cdiv(M, tm),)

    # Memory-bound kernel: advise XLA with a bytes-dominated cost estimate.
    cost = pl.CostEstimate(
        flops=2 * M * K * N,
        transcendentals=0,
        bytes_accessed=4 * (M * K + K * N + N + M * N),
    )

    out2d = pl.pallas_call(
        _linear_kernel,
        out_shape=jax.ShapeDtypeStruct((M, N), x.dtype),
        grid_spec=pltpu.PrefetchScalarGridSpec(
            num_scalar_prefetch=0,
            grid=grid,
            in_specs=[
                # x: stream row-tiles along M
                pl.BlockSpec((tm, K), lambda i: (i, 0)),
                # W^T: full (K, N), resident across all grid steps
                pl.BlockSpec((K, N), lambda i: (0, 0)),
                # bias: full (1, N), resident
                pl.BlockSpec((1, N), lambda i: (0, 0)),
            ],
            # full-width, lane-dense output slab per step
            out_specs=pl.BlockSpec((tm, N), lambda i: (i, 0)),
        ),
        compiler_params=pltpu.CompilerParams(
            dimension_semantics=("parallel",),
        ),
        cost_estimate=cost,
    )(x2d, w_t, b2d)

    return out2d.reshape(batch, seq, N)


if __name__ == "__main__":
    # Small shapes consistent with the module: BERT-style embeddings projected
    # down to embedding_dim.
    batch, seq, in_dim, embedding_dim = 2, 8, 32, 256

    key = jax.random.PRNGKey(0)
    kx, kw, kb = jax.random.split(key, 3)

    x = jax.random.normal(kx, (batch, seq, in_dim), dtype=jnp.float32)
    # Deterministic parameter init (mimicking nn.Linear's uniform init range).
    bound = 1.0 / (in_dim ** 0.5)
    weight = jax.random.uniform(
        kw, (embedding_dim, in_dim), dtype=jnp.float32, minval=-bound, maxval=bound
    )
    bias = jax.random.uniform(
        kb, (embedding_dim,), dtype=jnp.float32, minval=-bound, maxval=bound
    )

    y = text_embedding_forward(x, weight, bias)
    y = jax.block_until_ready(y)

    # Reference check against plain JAX (same math as torch nn.Linear).
    y_ref = x @ weight.T + bias
    assert y.shape == (batch, seq, embedding_dim)
    assert jnp.allclose(y, y_ref, atol=1e-5, rtol=1e-5)

    print("KERNEL_OK")
</pallas_src>

<mosaic_0001>
module attributes {stable_mosaic.version = 11 : i64} {
  func.func @_linear_kernel(%arg0: i32, %arg1: memref<16x32xf32, #tpu.memory_space<vmem>>, %arg2: memref<32x256xf32, #tpu.memory_space<vmem>>, %arg3: memref<1x256xf32, #tpu.memory_space<vmem>>, %arg4: memref<16x256xf32, #tpu.memory_space<vmem>>) attributes {dimension_semantics = [#tpu.dimension_semantics<parallel>], iteration_bounds = array<i64: 1>, scalar_prefetch = 0 : i64, scratch_operands = 0 : i64, tpu.core_type = #tpu.core_type<tc>, window_params = [{transform_indices = @transform_0, window_bounds = array<i64: 16, 32>}, {pipeline_mode = #tpu.pipeline_mode<synchronous>, transform_indices = @transform_1, window_bounds = array<i64: 32, 256>}, {pipeline_mode = #tpu.pipeline_mode<synchronous>, transform_indices = @transform_2, window_bounds = array<i64: 1, 256>}, {transform_indices = @transform_3, window_bounds = array<i64: 16, 256>}]} {
    %c0 = arith.constant 0 : index
    %c0_0 = arith.constant 0 : index
    %0 = vector.load %arg1[%c0, %c0_0] : memref<16x32xf32, #tpu.memory_space<vmem>>, vector<16x32xf32>
    %c0_1 = arith.constant 0 : index
    %c0_2 = arith.constant 0 : index
    %1 = vector.load %arg2[%c0_1, %c0_2] : memref<32x256xf32, #tpu.memory_space<vmem>>, vector<32x256xf32>
    %cst = arith.constant dense<0.000000e+00> : vector<16x256xf32>
    %2 = tpu.matmul %0, %1, %cst {dimension_numbers = #tpu.dot_dimension_numbers<[1], [0], [0], [1], [0, 0, 1, 1], [], []>} : vector<16x32xf32>, vector<32x256xf32>, vector<16x256xf32> -> vector<16x256xf32>
    %c0_3 = arith.constant 0 : index
    %c0_4 = arith.constant 0 : index
    %3 = vector.load %arg3[%c0_3, %c0_4] : memref<1x256xf32, #tpu.memory_space<vmem>>, vector<1x256xf32>
    %4 = vector.broadcast %3 : vector<1x256xf32> to vector<16x256xf32>
    %5 = arith.addf %2, %4 : vector<16x256xf32>
    %c0_5 = arith.constant 0 : index
    %c0_6 = arith.constant 0 : index
    %6 = vector.load %arg4[%c0_5, %c0_6] : memref<16x256xf32, #tpu.memory_space<vmem>>, vector<16x256xf32>
    tpu.vector_store %arg4[%c0_5, %c0_6], %5 {strides = array<i32>} : memref<16x256xf32, #tpu.memory_space<vmem>>, vector<16x256xf32>,
    return
  }
  func.func @transform_0(%arg0: i32) -> (i32, i32) {
    %c0_i32 = arith.constant 0 : i32
    %c0_i32_0 = arith.constant 0 : i32
    return %arg0, %c0_i32 : i32, i32
  }
  func.func @transform_1(%arg0: i32) -> (i32, i32) {
    %c0_i32 = arith.constant 0 : i32
    %c0_i32_0 = arith.constant 0 : i32
    %c0_i32_1 = arith.constant 0 : i32
    return %c0_i32, %c0_i32_0 : i32, i32
  }
  func.func @transform_2(%arg0: i32) -> (i32, i32) {
    %c0_i32 = arith.constant 0 : i32
    %c0_i32_0 = arith.constant 0 : i32
    %c0_i32_1 = arith.constant 0 : i32
    return %c0_i32, %c0_i32_0 : i32, i32
  }
  func.func @transform_3(%arg0: i32) -> (i32, i32) {
    %c0_i32 = arith.constant 0 : i32
    %c0_i32_0 = arith.constant 0 : i32
    return %arg0, %c0_i32 : i32, i32
  }
}

</mosaic_0001>

<llo_original>
// kernel: tpu_custom_call.1
$region0: #{tpu_custom_call.1}
  #allocation0 [shape = 'u32[]', space=smem, size = 0x4, offset = 0x4, fixed_abs, tag = 'smem constant byte address 0x4 - core index']
  #allocation1 [shape = 'u32[144,128]{1,0:T(1,128)}', space=vmem, size = 0x12000, scoped, tag = 'internal scratch']
  %s0 = inlined_call_operand.hbm [shape: f32[16,32], index: 0, kind: input, shape index: {}]
  %s1 = inlined_call_operand.hbm [shape: f32[32,256], index: 1, kind: input, shape index: {}]
  %s2 = inlined_call_operand.vmem [shape: f32[1,256], index: 2, kind: input, shape index: {}]
  %s3 = inlined_call_operand.hbm [shape: f32[16,256], index: 3, kind: output, shape index: {}]
  %s4 = sld [smem:[#allocation0]]
  $region30: #{tpu_custom_call.1} parent=0
    _
  %s6 = ssub.s32 1, %s4
  %s7 = scalar_select 0, %s6, %s4
  $region1: #{tpu_custom_call.1} parent=0
    #allocation2 [shape = 'u8[8192]{0}', space=vmem, size = 0x2000, scoped, tag = 'input window, operand 0, single buffered']
    #allocation3 [shape = 's32[1]{0}', space=sflag, size = 0x4, scoped, tag = 'scoped memory for tpu_custom_call.1']
    #allocation4 [shape = 's32[1]{0}', space=sflag, size = 0x4, scoped, tag = 'scoped memory for tpu_custom_call.1']
    #allocation5 [shape = 'u8[32768]{0}', space=vmem, size = 0x8000, scoped, tag = 'input window, operand 1, single buffered']
    #allocation6 [shape = 's32[1]{0}', space=sflag, size = 0x4, scoped, tag = 'scoped memory for tpu_custom_call.1']
    #allocation7 [shape = 'u8[16384]{0}', space=vmem, size = 0x4000, scoped, tag = 'output window, operand 0, single buffered']
    %8 = vsyncpa [#allocation3], 0
    %9 = vsyncpa [#allocation6], 0
    %10 = vsyncpa [#allocation4], 0
    // Predicated region
    $region2: #{tpu_custom_call.1} parent=1 // pred_check
      _
    $region3: #{tpu_custom_call.1} parent=1 // pred_check_branch
      %12 = sbr.rel (0) target = $region5
    $region4: #{tpu_custom_call.1} parent=1 // pred_region
      %s14 = ssub.s32 256, 256
      %15 = vsyncadd [#allocation3], %s14
      %s16 = sshll.u32 [#allocation2], 4
      %s17 = int_to_ptr.vmem [resolvable:$true] %s16
      %22 = dma.hbm_to_vmem [thread:$0]  %s0, 256, %s17, [#allocation3], 128, 128, 8
    $region5: #{tpu_custom_call.1} parent=1 // pred_fallthru
      _
    // Predicated region
    $region6: #{tpu_custom_call.1} parent=1 // pred_check
      _
    $region7: #{tpu_custom_call.1} parent=1 // pred_check_branch
      %24 = sbr.rel (0) target = $region9
    $region8: #{tpu_custom_call.1} parent=1 // pred_region
      %s26 = ssub.s32 1024, 1024
      %27 = vsyncadd [#allocation6], %s26
      %s28 = sshll.u32 [#allocation5], 4
      %s29 = int_to_ptr.vmem [resolvable:$true] %s28
      %34 = dma.hbm_to_vmem [thread:$0]  %s1, 1024, %s29, [#allocation6], 256, 256, 16
    $region9: #{tpu_custom_call.1} parent=1 // pred_fallthru
      _
    // Predicated region
    $region10: #{tpu_custom_call.1} parent=1 // pred_check
      _
    $region11: #{tpu_custom_call.1} parent=1 // pred_check_branch
      %36 = sbr.rel (0) target = $region13
    $region12: #{tpu_custom_call.1} parent=1 // pred_region
      _
    $region13: #{tpu_custom_call.1} parent=1 // pred_fallthru
      _
    // Predicated region
    $region14: #{tpu_custom_call.1} parent=1 // pred_check
      _
    $region15: #{tpu_custom_call.1} parent=1 // pred_check_branch
      %38 = sbr.rel (0) target = $region17
    $region16: #{tpu_custom_call.1} parent=1 // pred_region
      %39 = dma.done [#allocation3], 256
    $region17: #{tpu_custom_call.1} parent=1 // pred_fallthru
      _
    // Predicated region
    $region18: #{tpu_custom_call.1} parent=1 // pred_check
      _
    $region19: #{tpu_custom_call.1} parent=1 // pred_check_branch
      %41 = sbr.rel (0) target = $region21
    $region20: #{tpu_custom_call.1} parent=1 // pred_region
      %42 = dma.done [#allocation6], 1024
    $region21: #{tpu_custom_call.1} parent=1 // pred_fallthru
      _
    %v43 = vld [vmem:[#allocation2] sm:$0xff]
    %v44 = vld [vmem:[#allocation2 + $0x8] sm:$0xff]
    %v45 = vld [vmem:[#allocation5] sm:$0xff]
    %v46 = vld [vmem:[#allocation5 + $0x8] sm:$0xff]
    %v47 = vld [vmem:[#allocation5 + $0x10] sm:$0xff]
    %v48 = vld [vmem:[#allocation5 + $0x18] sm:$0xff]
    %v49 = vld [vmem:[#allocation5 + $0x20] sm:$0xff]
    %v50 = vld [vmem:[#allocation5 + $0x28] sm:$0xff]
    %v51 = vld [vmem:[#allocation5 + $0x30] sm:$0xff]
    %v52 = vld [vmem:[#allocation5 + $0x38] sm:$0xff]
    %v53 = vld [vmem:[%s2] sm:$0x3]
    %v55 = vlaneseq
    %v56 = vshrl.u32 %v55, 7
    %v57 = vsub.s32 0, %v56
    %v58 = vrot.slane %v53, %v57
    %v59 = vlaneseq
    %v60 = vshrl.u32 %v59, 7
    %v61 = vsub.s32 1, %v60
    %v62 = vrot.slane %v53, %v61
    %vm65 = vcmask 261120
    %v67 = vsel %vm65, %v43, 0
    %v70 = vsel %vm65, %v44, 0
    %72 = vmatprep.subr.mxu0 %v46
    %73 = vmatpush1.msra.mxu0 %v45
    %74 = vmatprep.subr.mxu0 %v48
    %75 = vmatpush1.msra.mxu0 %v47
    %76 = vmatprep.subr.mxu0 %v50
    %77 = vmatpush1.msra.mxu0 %v49
    %78 = vmatprep.subr.mxu0 %v52
    %79 = vmatpush1.msra.mxu0 %v51
    %80 = vmatprep.subr.mxu0 0.0
    %81 = vmatpush1.msra.mxu0 0.0
    %82 = vmatprep.subr.mxu0 0.0
    %83 = vmatpush1.msra.mxu0 0.0
    %84 = vmatprep.subr.mxu0 0.0
    %85 = vmatpush1.msra.mxu0 0.0
    %86 = vmatprep.subr.mxu0 0.0
    %87 = vmatpush1.msra.mxu0 0.0
    %88 = vmatprep.subr.mxu0 0.0
    %89 = vmatpush1.msra.mxu0 0.0
    %90 = vmatprep.subr.mxu0 0.0
    %91 = vmatpush1.msra.mxu0 0.0
    %92 = vmatprep.subr.mxu0 0.0
    %93 = vmatpush1.msra.mxu0 0.0
    %94 = vmatprep.subr.mxu0 0.0
    %95 = vmatpush1.msra.mxu0 0.0
    %96 = vmatprep.subr.mxu0 0.0
    %97 = vmatpush1.msra.mxu0 0.0
    %98 = vmatprep.subr.mxu0 0.0
    %99 = vmatpush1.msra.mxu0 0.0
    %100 = vmatprep.subr.mxu0 0.0
    %101 = vmatpush1.msra.mxu0 0.0
    %102 = vmatprep.subr.mxu0 0.0
    %103 = vmatpush1.msra.mxu0 0.0
    %104 = vmatprep.subr.mxu0 0.0
    %105 = vmatpush1.msra.mxu0 0.0
    %106 = vmatprep.subr.mxu0 0.0
    %107 = vmatpush1.msra.mxu0 0.0
    %108 = vmatprep.subr.mxu0 0.0
    %109 = vmatpush1.msra.mxu0 0.0
    %110 = vmatprep.subr.mxu0 0.0
    %111 = vmatpush1.msra.mxu0 0.0
    %112 = vmatprep.subr.mxu0 0.0
    %113 = vmatpush1.msra.mxu0 0.0
    %114 = vmatprep.subr.mxu0 0.0
    %115 = vmatpush1.msra.mxu0 0.0
    %116 = vmatprep.subr.mxu0 0.0
    %117 = vmatpush1.msra.mxu0 0.0
    %118 = vmatprep.subr.mxu0 0.0
    %119 = vmatpush1.msra.mxu0 0.0
    %120 = vmatprep.subr.mxu0 0.0
    %121 = vmatpush1.msra.mxu0 0.0
    %122 = vmatprep.subr.mxu0 0.0
    %123 = vmatpush1.msra.mxu0 0.0
    %124 = vmatprep.subr.mxu0 0.0
    %125 = vmatpush1.msra.mxu0 0.0
    %126 = vmatprep.subr.mxu0 0.0
    %127 = vmatpush1.msra.mxu0 0.0
    %128 = vmatprep.subr.mxu0 0.0
    %129 = vmatpush1.msra.mxu0 0.0
    %130 = vmatprep.subr.mxu0 0.0
    %131 = vmatpush1.msra.mxu0 0.0
    %132 = vmatprep.subr.mxu0 0.0
    %133 = vmatpush1.msra.mxu0 0.0
    %134 = vmatprep.subr.mxu0 0.0
    %135 = vmatpush1.msra.mxu0 0.0
    %136 = vmatprep.mubr.f32.mxu0 0.0
    %137 = vmatmul.mubr.f32.gmra.mrb[0].mxu0 %v67
    %v138 = vpop.f32.mrb[0].mxu0
    %v139 = vadd.f32 %v58, %v138
    %v140 = vpop.f32.mrb[0].mxu0
    %v141 = vadd.f32 %v62, %v140
    %142 = vmatprep.mubr.f32.mxu0 0.0
    %143 = vmatmul.mubr.f32.gmra.mrb[0].mxu0 %v70
    %v144 = vpop.f32.mrb[0].mxu0
    %v145 = vadd.f32 %v58, %v144
    %v146 = vpop.f32.mrb[0].mxu0
    %v147 = vadd.f32 %v62, %v146
    %148 = vdwg.mxu0
    %149 = vst [vmem:[#allocation7] sm:$0xff] %v139
    %150 = vst [vmem:[#allocation7 + $0x8] sm:$0xff] %v141
    %151 = vst [vmem:[#allocation7 + $0x10] sm:$0xff] %v145
    %152 = vst [vmem:[#allocation7 + $0x18] sm:$0xff] %v147
    // Predicated region
    $region22: #{tpu_custom_call.1} parent=1 // pred_check
      _
    $region23: #{tpu_custom_call.1} parent=1 // pred_check_branch
      %154 = sbr.rel (0) target = $region25
    $region24: #{tpu_custom_call.1} parent=1 // pred_region
      %s156 = ssub.s32 512, 512
      %157 = vsyncadd [#allocation4], %s156
      %s158 = sshll.u32 [#allocation7], 4
      %s159 = int_to_ptr.vmem [resolvable:$true] %s158
      %164 = dma.vmem_to_hbm [thread:$0]  %s159, 512, %s3, [#allocation4], 256, 256, 16
    $region25: #{tpu_custom_call.1} parent=1 // pred_fallthru
      _
    // Predicated region
    $region26: #{tpu_custom_call.1} parent=1 // pred_check
      _
    $region27: #{tpu_custom_call.1} parent=1 // pred_check_branch
      %166 = sbr.rel (0) target = $region29
    $region28: #{tpu_custom_call.1} parent=1 // pred_region
      %167 = dma.done [#allocation4], 512
    $region29: #{tpu_custom_call.1} parent=1 // pred_fallthru
      _
    %168 = vsyncpa [#allocation3], 1
    %169 = vsyncpa [#allocation6], 1
    %170 = vsyncpa [#allocation4], 1

</llo_original>
